<compile_context>
chip_gen: v5e
topology: v5e:2x2
jax: 0.10.0
libtpu: 0.0.40
codegen_flags: <defaults>
</compile_context>

<pallas_src>
import jax
import jax.numpy as jnp
from jax.experimental import pallas as pl
from jax.experimental.pallas import tpu as pltpu

EPS = 1e-5


def cbn2d_kernel(x_ref, gamma_ref, beta_ref, o_ref):
    # x_ref: (N, TC, HW) f32 ; gamma_ref / beta_ref: (N, TC, 1) f32 ; o_ref: (N, TC, HW) f32
    x = x_ref[...]
    n, _, hw = x.shape
    inv_count = 1.0 / float(n * hw)

    # ---- single-pass per-channel batch statistics over (N, HW) ----
    s = jnp.sum(x, axis=(0, 2), keepdims=True)        # (1, TC, 1)
    ss = jnp.sum(x * x, axis=(0, 2), keepdims=True)   # (1, TC, 1)
    mean = s * inv_count
    var = jnp.maximum(ss * inv_count - mean * mean, 0.0)   # biased var, clamp cancellation
    inv_std = jax.lax.rsqrt(var + EPS)                # (1, TC, 1)

    # ---- fold BN + conditional affine into a single per-element FMA ----
    # x_hat*(1+gamma)+beta == x*a + b  with  a = inv_std*(1+gamma),  b = beta - mean*a
    a = inv_std * (1.0 + gamma_ref[...])              # (N, TC, 1)
    b = beta_ref[...] - mean * a                      # (N, TC, 1)
    o_ref[...] = x * a + b


def _channel_tile(C, N, HW, bytes_per_elem=4, target_block_bytes=4 * 1024 * 1024):
    """Pick a channel tile TC (multiple of 8 dividing C) so block (N, TC, HW) ~ target size."""
    if C % 8 != 0:
        return C                               # small / irregular C: one block over channels
    per_channel = max(N * HW * bytes_per_elem, 1)
    tc = max(8, min(C, (target_block_bytes // per_channel) // 8 * 8))
    while C % tc != 0:                         # guarantee exact tiling (tc=8 always divides)
        tc -= 8
    return tc
    # TODO(synk): for very large N*HW (a single channel > ~4 MiB) the reduction axis itself
    # would need tiling (two-pass stats with an accumulator); not needed at these shapes.


def conditional_batch_norm_2d(x_nchw, condition, wg, bg, wb, bb):
    """x_nchw: (N, C, H, W), condition: (N, C). Returns (N, C, H, W)."""
    N, C, H, W = x_nchw.shape
    HW = H * W
    f32 = jnp.float32

    # gamma/beta Linear layers are tiny (N, C) matmuls: keep them in XLA outside the kernel.
    cond = condition.astype(f32)
    gamma = cond @ wg.astype(f32).T + bg.astype(f32)   # (N, C)
    beta = cond @ wb.astype(f32).T + bb.astype(f32)    # (N, C)

    # Free reshapes only (no HBM-round-trip transposes).
    x3 = x_nchw.astype(f32).reshape(N, C, HW)
    gamma3 = gamma[:, :, None]                         # (N, C, 1)
    beta3 = beta[:, :, None]                           # (N, C, 1)

    TC = _channel_tile(C, N, HW)
    grid = (C // TC,)

    out = pl.pallas_call(
        cbn2d_kernel,
        out_shape=jax.ShapeDtypeStruct((N, C, HW), f32),
        grid=grid,
        in_specs=[
            pl.BlockSpec((N, TC, HW), lambda c: (0, c, 0)),
            pl.BlockSpec((N, TC, 1), lambda c: (0, c, 0)),
            pl.BlockSpec((N, TC, 1), lambda c: (0, c, 0)),
        ],
        out_specs=pl.BlockSpec((N, TC, HW), lambda c: (0, c, 0)),
        compiler_params=pltpu.CompilerParams(
            dimension_semantics=("parallel",),          # shard channel blocks across TCs (v7x)
            vmem_limit_bytes=32 * 1024 * 1024,
        ),
    )(x3, gamma3, beta3)

    return out.reshape(N, C, H, W)


def reference(x_nchw, condition, wg, bg, wb, bb):
    """Pure-JAX reference mirroring the PyTorch forward (training-mode BN)."""
    mean = jnp.mean(x_nchw, axis=(0, 2, 3), keepdims=True)
    var = jnp.mean((x_nchw - mean) ** 2, axis=(0, 2, 3), keepdims=True)
    x_hat = (x_nchw - mean) / jnp.sqrt(var + EPS)
    gamma = condition @ wg.T + bg            # (N, C)
    beta = condition @ wb.T + bb             # (N, C)
    gamma = gamma[:, :, None, None]
    beta = beta[:, :, None, None]
    return x_hat + x_hat * gamma + beta


if __name__ == "__main__":
    key = jax.random.PRNGKey(0)
    N, C, H, W = 2, 4, 16, 16

    k_x, k_c, k_wg, k_bg, k_wb, k_bb = jax.random.split(key, 6)
    x = jax.random.normal(k_x, (N, C, H, W), dtype=jnp.float32)
    condition = jax.random.normal(k_c, (N, C), dtype=jnp.float32)

    # Deterministic nn.Linear-style init: U(-1/sqrt(C), 1/sqrt(C))
    bound = 1.0 / jnp.sqrt(jnp.float32(C))
    wg = jax.random.uniform(k_wg, (C, C), minval=-bound, maxval=bound, dtype=jnp.float32)
    bg = jax.random.uniform(k_bg, (C,), minval=-bound, maxval=bound, dtype=jnp.float32)
    wb = jax.random.uniform(k_wb, (C, C), minval=-bound, maxval=bound, dtype=jnp.float32)
    bb = jax.random.uniform(k_bb, (C,), minval=-bound, maxval=bound, dtype=jnp.float32)

    out = conditional_batch_norm_2d(x, condition, wg, bg, wb, bb)
    out = jax.block_until_ready(out)

    ref = jax.block_until_ready(reference(x, condition, wg, bg, wb, bb))
    assert out.shape == (N, C, H, W)
    assert jnp.allclose(out, ref, atol=1e-4, rtol=1e-4), "mismatch vs reference"

    print("KERNEL_OK")
</pallas_src>

<mosaic_0001>
module attributes {stable_mosaic.version = 11 : i64} {
  func.func @cbn2d_kernel(%arg0: i32, %arg1: memref<2x4x256xf32, #tpu.memory_space<vmem>>, %arg2: memref<2x4x1xf32, #tpu.memory_space<vmem>>, %arg3: memref<2x4x1xf32, #tpu.memory_space<vmem>>, %arg4: memref<2x4x256xf32, #tpu.memory_space<vmem>>) attributes {dimension_semantics = [#tpu.dimension_semantics<parallel>], iteration_bounds = array<i64: 1>, scalar_prefetch = 0 : i64, scratch_operands = 0 : i64, tpu.core_type = #tpu.core_type<tc>, window_params = [{transform_indices = @transform_0, window_bounds = array<i64: 2, 4, 256>}, {transform_indices = @transform_1, window_bounds = array<i64: 2, 4, 1>}, {transform_indices = @transform_2, window_bounds = array<i64: 2, 4, 1>}, {transform_indices = @transform_3, window_bounds = array<i64: 2, 4, 256>}]} {
    %c0 = arith.constant 0 : index
    %c0_0 = arith.constant 0 : index
    %c0_1 = arith.constant 0 : index
    %0 = vector.load %arg1[%c0, %c0_0, %c0_1] : memref<2x4x256xf32, #tpu.memory_space<vmem>>, vector<2x4x256xf32>
    %cst = arith.constant dense<0.000000e+00> : vector<4xf32>
    %1 = vector.multi_reduction <add>, %0, %cst [0, 2] : vector<2x4x256xf32> to vector<4xf32>
    %2 = vector.shape_cast %1 : vector<4xf32> to vector<1x4x1xf32>
    %3 = arith.mulf %0, %0 : vector<2x4x256xf32>
    %cst_2 = arith.constant dense<0.000000e+00> : vector<4xf32>
    %4 = vector.multi_reduction <add>, %3, %cst_2 [0, 2] : vector<2x4x256xf32> to vector<4xf32>
    %5 = vector.shape_cast %4 : vector<4xf32> to vector<1x4x1xf32>
    %cst_3 = arith.constant 0.001953125 : f32
    %6 = vector.broadcast %cst_3 : f32 to vector<1x4x1xf32>
    %7 = arith.mulf %2, %6 : vector<1x4x1xf32>
    %cst_4 = arith.constant 0.001953125 : f32
    %8 = vector.broadcast %cst_4 : f32 to vector<1x4x1xf32>
    %9 = arith.mulf %5, %8 : vector<1x4x1xf32>
    %10 = arith.mulf %7, %7 : vector<1x4x1xf32>
    %11 = arith.subf %9, %10 : vector<1x4x1xf32>
    %cst_5 = arith.constant 0.000000e+00 : f32
    %12 = vector.broadcast %cst_5 : f32 to vector<1x4x1xf32>
    %13 = arith.maximumf %11, %12 : vector<1x4x1xf32>
    %cst_6 = arith.constant 9.99999974E-6 : f32
    %14 = vector.broadcast %cst_6 : f32 to vector<1x4x1xf32>
    %15 = arith.addf %13, %14 : vector<1x4x1xf32>
    %16 = math.rsqrt %15 : vector<1x4x1xf32>
    %c0_7 = arith.constant 0 : index
    %c0_8 = arith.constant 0 : index
    %c0_9 = arith.constant 0 : index
    %17 = vector.load %arg2[%c0_7, %c0_8, %c0_9] : memref<2x4x1xf32, #tpu.memory_space<vmem>>, vector<2x4x1xf32>
    %cst_10 = arith.constant 1.000000e+00 : f32
    %18 = vector.broadcast %cst_10 : f32 to vector<2x4x1xf32>
    %19 = arith.addf %18, %17 : vector<2x4x1xf32>
    %20 = vector.broadcast %16 : vector<1x4x1xf32> to vector<2x4x1xf32>
    %21 = arith.mulf %20, %19 : vector<2x4x1xf32>
    %c0_11 = arith.constant 0 : index
    %c0_12 = arith.constant 0 : index
    %c0_13 = arith.constant 0 : index
    %22 = vector.load %arg3[%c0_11, %c0_12, %c0_13] : memref<2x4x1xf32, #tpu.memory_space<vmem>>, vector<2x4x1xf32>
    %23 = vector.broadcast %7 : vector<1x4x1xf32> to vector<2x4x1xf32>
    %24 = arith.mulf %23, %21 : vector<2x4x1xf32>
    %25 = arith.subf %22, %24 : vector<2x4x1xf32>
    %26 = vector.broadcast %21 : vector<2x4x1xf32> to vector<2x4x256xf32>
    %27 = arith.mulf %0, %26 : vector<2x4x256xf32>
    %28 = vector.broadcast %25 : vector<2x4x1xf32> to vector<2x4x256xf32>
    %29 = arith.addf %27, %28 : vector<2x4x256xf32>
    %c0_14 = arith.constant 0 : index
    %c0_15 = arith.constant 0 : index
    %c0_16 = arith.constant 0 : index
    %30 = vector.load %arg4[%c0_14, %c0_15, %c0_16] : memref<2x4x256xf32, #tpu.memory_space<vmem>>, vector<2x4x256xf32>
    tpu.vector_store %arg4[%c0_14, %c0_15, %c0_16], %29 {strides = array<i32>} : memref<2x4x256xf32, #tpu.memory_space<vmem>>, vector<2x4x256xf32>,
    return
  }
  func.func @transform_0(%arg0: i32) -> (i32, i32, i32) {
    %c0_i32 = arith.constant 0 : i32
    %c0_i32_0 = arith.constant 0 : i32
    %c0_i32_1 = arith.constant 0 : i32
    return %c0_i32, %arg0, %c0_i32_0 : i32, i32, i32
  }
  func.func @transform_1(%arg0: i32) -> (i32, i32, i32) {
    %c0_i32 = arith.constant 0 : i32
    %c0_i32_0 = arith.constant 0 : i32
    %c0_i32_1 = arith.constant 0 : i32
    return %c0_i32, %arg0, %c0_i32_0 : i32, i32, i32
  }
  func.func @transform_2(%arg0: i32) -> (i32, i32, i32) {
    %c0_i32 = arith.constant 0 : i32
    %c0_i32_0 = arith.constant 0 : i32
    %c0_i32_1 = arith.constant 0 : i32
    return %c0_i32, %arg0, %c0_i32_0 : i32, i32, i32
  }
  func.func @transform_3(%arg0: i32) -> (i32, i32, i32) {
    %c0_i32 = arith.constant 0 : i32
    %c0_i32_0 = arith.constant 0 : i32
    %c0_i32_1 = arith.constant 0 : i32
    return %c0_i32, %arg0, %c0_i32_0 : i32, i32, i32
  }
}

</mosaic_0001>

<llo_original>
// kernel: tpu_custom_call.1
$region0: #{tpu_custom_call.1}
  #allocation0 [shape = 'u32[]', space=smem, size = 0x4, offset = 0x4, fixed_abs, tag = 'smem constant byte address 0x4 - core index']
  #allocation1 [shape = 'u32[72,128]{1,0:T(1,128)}', space=vmem, size = 0x9000, scoped, tag = 'internal scratch']
  %s0 = inlined_call_operand.vmem [shape: f32[2,4,256], index: 0, kind: input, shape index: {}]
  %s1 = inlined_call_operand.vmem [shape: f32[2,4,1], index: 1, kind: input, shape index: {}]
  %s2 = inlined_call_operand.vmem [shape: f32[2,4,1], index: 2, kind: input, shape index: {}]
  %s3 = inlined_call_operand.hbm [shape: f32[2,4,256], index: 3, kind: output, shape index: {}]
  %s4 = sld [smem:[#allocation0]]
  $region22: #{tpu_custom_call.1} parent=0
    _
  %s6 = ssub.s32 1, %s4
  %s7 = scalar_select 0, %s6, %s4
  $region1: #{tpu_custom_call.1} parent=0
    #allocation2 [shape = 'u8[8192]{0}', space=vmem, size = 0x2000, scoped, tag = 'output window, operand 0, single buffered']
    #allocation3 [shape = 's32[1]{0}', space=sflag, size = 0x4, scoped, tag = 'scoped memory for tpu_custom_call.1']
    %8 = vsyncpa [#allocation3], 0
    // Predicated region
    $region2: #{tpu_custom_call.1} parent=1 // pred_check
      _
    $region3: #{tpu_custom_call.1} parent=1 // pred_check_branch
      %10 = sbr.rel (0) target = $region5
    $region4: #{tpu_custom_call.1} parent=1 // pred_region
      _
    $region5: #{tpu_custom_call.1} parent=1 // pred_fallthru
      _
    // Predicated region
    $region6: #{tpu_custom_call.1} parent=1 // pred_check
      _
    $region7: #{tpu_custom_call.1} parent=1 // pred_check_branch
      %12 = sbr.rel (0) target = $region9
    $region8: #{tpu_custom_call.1} parent=1 // pred_region
      _
    $region9: #{tpu_custom_call.1} parent=1 // pred_fallthru
      _
    // Predicated region
    $region10: #{tpu_custom_call.1} parent=1 // pred_check
      _
    $region11: #{tpu_custom_call.1} parent=1 // pred_check_branch
      %14 = sbr.rel (0) target = $region13
    $region12: #{tpu_custom_call.1} parent=1 // pred_region
      _
    $region13: #{tpu_custom_call.1} parent=1 // pred_fallthru
      _
    %v15 = vld [vmem:[%s0] sm:$0xff]
    %v16 = vld [vmem:[%s0 + $0x8] sm:$0xff]
    %19 = vst [vmem:[#allocation1] ss:$2 sm:$0xff] %v15
    %v20 = vld.sshfl [vmem:[#allocation1] sm:$0xff pattern:$0x75316420]
    %v21 = vld.sshfl [vmem:[#allocation1 + $0x8] sm:$0xff pattern:$0x75316420]
    %s22 = scalar_lea.vmem [#allocation1], 16
    %23 = vst [vmem:[%s22] ss:$2 sm:$0xff] %v16
    %v24 = vld.sshfl [vmem:[#allocation1 + $0x10] sm:$0xff pattern:$0x75316420]
    %v25 = vld.sshfl [vmem:[#allocation1 + $0x18] sm:$0xff pattern:$0x75316420]
    %vm30 = vcmask 1043456
    %v31 = vsel %vm30, %v20, 0.0
    %v32 = vsel %vm30, %v21, 0.0
    %v33 = vadd.f32 %v31, %v32
    %v34 = vsel %vm30, %v24, 0.0
    %v35 = vadd.f32 %v33, %v34
    %v36 = vsel %vm30, %v25, 0.0
    %v37 = vadd.f32 %v35, %v36
    %38 = vadd.xlane.f32.xlu0 %v37
    %v39 = vpop.xlane.xlu0 %38
    %v40 = vmul.f32 %v15, %v15
    %v41 = vmul.f32 %v16, %v16
    %44 = vst [vmem:[#allocation1] ss:$2 sm:$0xff] %v40
    %v45 = vld.sshfl [vmem:[#allocation1] sm:$0xff pattern:$0x75316420]
    %v46 = vld.sshfl [vmem:[#allocation1 + $0x8] sm:$0xff pattern:$0x75316420]
    %s47 = scalar_lea.vmem [#allocation1], 16
    %48 = vst [vmem:[%s47] ss:$2 sm:$0xff] %v41
    %v49 = vld.sshfl [vmem:[#allocation1 + $0x10] sm:$0xff pattern:$0x75316420]
    %v50 = vld.sshfl [vmem:[#allocation1 + $0x18] sm:$0xff pattern:$0x75316420]
    %v55 = vsel %vm30, %v45, 0.0
    %v56 = vsel %vm30, %v46, 0.0
    %v57 = vadd.f32 %v55, %v56
    %v58 = vsel %vm30, %v49, 0.0
    %v59 = vadd.f32 %v57, %v58
    %v60 = vsel %vm30, %v50, 0.0
    %v61 = vadd.f32 %v59, %v60
    %62 = vadd.xlane.f32.xlu0 %v61
    %v63 = vpop.xlane.xlu0 %62
    %v64 = vmul.f32 %v39, 0.001953125
    %v65 = vmul.f32 %v63, 0.001953125
    %v66 = vmul.f32 %v64, %v64
    %v67 = vsub.f32 %v65, %v66
    %v68 = vmax.f32 %v67, 0.0
    %v69 = vadd.f32 %v68, 1e-05
    %v70 = vrsqrt.pop %v69
    %v71 = vmul.f32 %v70, %v69
    %v72 = vmul.f32 %v71, %v70
    %v73 = vmul.f32 0.5, %v72
    %v74 = vsub.f32 1.5, %v73
    %v75 = vmul.f32 %v70, %v74
    %vm76 = vweird.f32 %v69
    %vm77 = vweird.f32 %v70
    %vm78 = vmor %vm76, %vm77
    %v79 = vsel %vm78, %v70, %v75
    %v80 = vld [vmem:[%s1] sm:$0xf]
    %v81 = vld [vmem:[%s1 + $0x4] sm:$0xf]
    %v82 = vadd.f32 %v80, 1.0
    %v83 = vadd.f32 %v81, 1.0
    %v84 = vmul.f32 %v79, %v82
    %v85 = vmul.f32 %v79, %v83
    %v86 = vld [vmem:[%s2] sm:$0xf]
    %v87 = vld [vmem:[%s2 + $0x4] sm:$0xf]
    %v88 = vmul.f32 %v64, %v84
    %v89 = vmul.f32 %v64, %v85
    %v90 = vsub.f32 %v86, %v88
    %v91 = vsub.f32 %v87, %v89
    %93 = vset.pattern.permute.xlu0 0
    %94 = vperm.xlu0 %93, %v84
    %v95 = vpop.permute.xlu0 %94
    %97 = vset.pattern.permute.xlu0 0
    %98 = vperm.xlu0 %97, %v85
    %v99 = vpop.permute.xlu0 %98
    %v101 = vunpack.c.l.s4 839922192
    %v102 = vunpack.c.0.s8 %v101
    %v103 = vperm.slane %v95, %v102
    %v105 = vunpack.c.l.s4 839922192
    %v106 = vunpack.c.0.s8 %v105
    %v107 = vperm.slane %v99, %v106
    %v110 = vmul.f32 %v15, %v103
    %v111 = vmul.f32 %v16, %v107
    %113 = vset.pattern.permute.xlu0 0
    %114 = vperm.xlu0 %113, %v90
    %v115 = vpop.permute.xlu0 %114
    %117 = vset.pattern.permute.xlu0 0
    %118 = vperm.xlu0 %117, %v91
    %v119 = vpop.permute.xlu0 %118
    %v121 = vunpack.c.l.s4 839922192
    %v122 = vunpack.c.0.s8 %v121
    %v123 = vperm.slane %v115, %v122
    %v125 = vunpack.c.l.s4 839922192
    %v126 = vunpack.c.0.s8 %v125
    %v127 = vperm.slane %v119, %v126
    %v130 = vadd.f32 %v110, %v123
    %v131 = vadd.f32 %v111, %v127
    %132 = vst [vmem:[#allocation2] sm:$0xff] %v130
    %133 = vst [vmem:[#allocation2 + $0x8] sm:$0xff] %v131
    // Predicated region
    $region14: #{tpu_custom_call.1} parent=1 // pred_check
      _
    $region15: #{tpu_custom_call.1} parent=1 // pred_check_branch
      %135 = sbr.rel (0) target = $region17
    $region16: #{tpu_custom_call.1} parent=1 // pred_region
      %137 = vsyncadd [#allocation3], 0
      %s138 = sshll.u32 [#allocation2], 4
      %s139 = int_to_ptr.vmem [resolvable:$true] %s138
      %s140 = sshll.u32 %s3, 4
      %s141 = int_to_ptr.hbm [resolvable:$true] %s140
      %146 = dma.vmem_to_hbm [thread:$0]  %s139, 256, %s141, [#allocation3], 128, 128, 8
    $region17: #{tpu_custom_call.1} parent=1 // pred_fallthru
      _
    // Predicated region
    $region18: #{tpu_custom_call.1} parent=1 // pred_check
      _
    $region19: #{tpu_custom_call.1} parent=1 // pred_check_branch
      %148 = sbr.rel (0) target = $region21
    $region20: #{tpu_custom_call.1} parent=1 // pred_region
      %150 = dma.done [#allocation3], 256
    $region21: #{tpu_custom_call.1} parent=1 // pred_fallthru
      _
    %151 = vsyncpa [#allocation3], 1

</llo_original>
